<compile_context>
chip_gen: v7x
topology: tpu7x:2x2x1
jax: 0.10.0
libtpu: 0.0.40
codegen_flags: <defaults>
</compile_context>

<pallas_src>
import functools

import jax
import jax.numpy as jnp
from jax.experimental import pallas as pl
from jax.experimental.pallas import tpu as pltpu

_CHUNK_LANES = 128      # one vreg-width of lanes per VPU partial-sum add
_CHUNKS_PER_STEP = 8    # manual unroll factor inside the reduction fori_loop
_DEFAULT_VMEM_CAP = 64 * 1024 * 1024   # conservative fallback (v7x per-TC VMEM)


# ---------------------------------------------------------------------------
# Hardware-aware budgets.
# ---------------------------------------------------------------------------
@functools.lru_cache(maxsize=None)
def _vmem_budgets():
    cap = _DEFAULT_VMEM_CAP
    try:
        info = pltpu.get_tpu_info()
        cap = int(getattr(info, "vmem_capacity_bytes", cap)) or cap
    except Exception:  # non-TPU backend / API drift: fall back to safe default
        pass
    vmem_limit = (cap * 3) // 4        # 96 MiB on 128 MiB chips, 48 MiB on v7x
    fused_budget = (cap * 5) // 8      # 80 MiB on 128 MiB chips, 40 MiB on v7x
    return cap, vmem_limit, fused_budget


# ---------------------------------------------------------------------------
# In-kernel helpers: two-stage spatial reduction + excite MLP.
# ---------------------------------------------------------------------------
def _accum_full_chunks(x_ref, acc, n_full):
    """acc (1, C, 128) f32 += lane-wise partial sums of the first n_full*128
    lanes of x_ref's block. Pure VPU adds; no cross-lane (XLU) reduce here."""
    n_groups = n_full // _CHUNKS_PER_STEP
    if n_groups > 0:
        def body(g, a):
            base = g * (_CHUNKS_PER_STEP * _CHUNK_LANES)
            for j in range(_CHUNKS_PER_STEP):
                start = pl.multiple_of(base + j * _CHUNK_LANES, _CHUNK_LANES)
                a = a + x_ref[:, :, pl.ds(start, _CHUNK_LANES)].astype(jnp.float32)
            return a
        acc = jax.lax.fori_loop(0, n_groups, body, acc)
    # Leftover full chunks (< _CHUNKS_PER_STEP of them), statically unrolled.
    for j in range(n_groups * _CHUNKS_PER_STEP, n_full):
        lo = j * _CHUNK_LANES
        acc = acc + x_ref[:, :, lo:lo + _CHUNK_LANES].astype(jnp.float32)
    return acc


def _accum_tile(x_ref, acc, n_lanes):
    """Add partial sums of the first n_lanes lanes of a block whose lane extent
    is a multiple of 128 (so the masked final chunk load stays in bounds)."""
    n_full, rem = divmod(n_lanes, _CHUNK_LANES)
    acc = _accum_full_chunks(x_ref, acc, n_full)
    if rem:
        lo = n_full * _CHUNK_LANES
        chunk = x_ref[:, :, lo:lo + _CHUNK_LANES].astype(jnp.float32)
        lane = jax.lax.broadcasted_iota(jnp.int32, chunk.shape, 2)
        acc = acc + jnp.where(lane < rem, chunk, 0.0)
    return acc


def _full_spatial_sum(x_ref, hw):
    """(1, C) f32 spatial sum of x_ref[:, :, :hw] without materializing a full
    f32 copy of the slab: 128-lane VPU partial sums, one final lane reduce."""
    c = x_ref.shape[1]
    n_full, rem = divmod(hw, _CHUNK_LANES)
    y = None
    if n_full > 0:
        acc = _accum_full_chunks(
            x_ref, jnp.zeros((1, c, _CHUNK_LANES), jnp.float32), n_full)
        y = jnp.sum(acc, axis=-1)
    if rem:
        lo = n_full * _CHUNK_LANES
        tail = jnp.sum(x_ref[:, :, lo:hw].astype(jnp.float32), axis=-1)
        y = tail if y is None else y + tail
    return y


def _excite(y, w1_ref, b1_ref, w2_ref, b2_ref):
    """Linear -> ReLU -> Linear -> h_sigmoid on (1, C), all in f32.
    The 1/HW of the average pool is pre-folded into w1 by the wrapper."""
    h = jnp.dot(y, w1_ref[...], preferred_element_type=jnp.float32) + b1_ref[...]
    h = jnp.maximum(h, 0.0)
    z = jnp.dot(h, w2_ref[...], preferred_element_type=jnp.float32) + b2_ref[...]
    return jnp.clip(z + 3.0, 0.0, 6.0) * (1.0 / 6.0)


# ---------------------------------------------------------------------------
# Fused single-kernel path: one batch element per grid step.
# ---------------------------------------------------------------------------
def _se_fused_kernel(x_ref, w1_ref, b1_ref, w2_ref, b2_ref, o_ref, *, hw):
    y = _full_spatial_sum(x_ref, hw)                       # (1, C) f32 spatial sum
    s = _excite(y, w1_ref, b1_ref, w2_ref, b2_ref)         # (1, C) f32 scale
    x = x_ref[...]                                         # original dtype
    o_ref[...] = x * s.astype(x.dtype)[:, :, None]


# ---------------------------------------------------------------------------
# Two-pass path, pass 1: global average pool + excite -> s of shape (B, C, 1).
# ---------------------------------------------------------------------------
def _pool_excite_kernel(x_ref, w1_ref, b1_ref, w2_ref, b2_ref, s_ref, acc_ref,
                        *, hw, tile):
    n_t = (hw + tile - 1) // tile                          # static
    t = pl.program_id(1)

    def excite_and_store(y):
        s = _excite(y, w1_ref, b1_ref, w2_ref, b2_ref)
        s_ref[...] = s[:, :, None].astype(s_ref.dtype)     # (1, C, 1)

    if n_t == 1:
        # Single spatial tile per batch: direct (chunked) sum + excite.
        excite_and_store(_full_spatial_sum(x_ref, hw))
        return

    # Multi-tile: `tile` is a multiple of 128 (enforced by the wrapper).
    @pl.when(t == 0)
    def _():
        acc_ref[...] = jnp.zeros_like(acc_ref)

    last = n_t - 1
    last_lanes = hw - last * tile                          # static valid lanes

    if last_lanes == tile:
        # HW divides evenly: one accumulation path, no masking anywhere.
        acc_ref[...] = _accum_tile(x_ref, acc_ref[...], tile)
    else:
        # Ragged spatial extent: masking only on the last tile.
        @pl.when(t < last)
        def _():
            acc_ref[...] = _accum_tile(x_ref, acc_ref[...], tile)

        @pl.when(t == last)
        def _():
            acc_ref[...] = _accum_tile(x_ref, acc_ref[...], last_lanes)

    # Epilogue once per batch: single 128->1 lane reduce + tiny excite matmuls.
    @pl.when(t == last)
    def _():
        excite_and_store(jnp.sum(acc_ref[...], axis=-1))


# ---------------------------------------------------------------------------
# Two-pass path, pass 2: broadcasted scale x * s, fully pipelined.
# ---------------------------------------------------------------------------
def _scale_kernel(s_ref, x_ref, o_ref):
    # (1, C, 1) broadcasts over the lane (spatial) axis of (1, C, tile).
    o_ref[...] = x_ref[...] * s_ref[...]


# ---------------------------------------------------------------------------
# Tile selection.
# ---------------------------------------------------------------------------
def _choose_hw_tile(C, HW, itemsize, target_bytes):
    """Largest lane-dense (multiple-of-128) spatial tile within the byte target,
    or the full spatial extent if it already fits / is tiny."""
    if HW <= 128 or C * HW * itemsize <= target_bytes:
        return HW
    t = (target_bytes // (C * itemsize)) // 128 * 128
    t = max(t, 128)
    return min(t, (HW // 128) * 128)


def _normalize_tile(hw_tile, HW):
    if hw_tile >= HW:
        return HW
    return max(128, (hw_tile // 128) * 128)


# ---------------------------------------------------------------------------
# Wrapper.
# ---------------------------------------------------------------------------
def _se_layer_impl(x_nchw, w1, b1, w2, b2, force_two_pass, hw_tile, donate):
    B, C, H, W = x_nchw.shape
    HW = H * W
    hidden = w1.shape[0]
    dtype = x_nchw.dtype
    itemsize = jnp.dtype(dtype).itemsize
    cap, vmem_limit, fused_budget = _vmem_budgets()

    x_flat = x_nchw.reshape(B, C, HW)                      # original dtype, no upcast

    # Pre-transpose weights (PyTorch Linear is y @ W.T + b) and fold the 1/HW
    # of the global average pool into the first weight matrix.
    w1_t = (jnp.asarray(w1, jnp.float32) / float(HW)).T    # (C, hidden)
    w2_t = jnp.asarray(w2, jnp.float32).T                  # (hidden, C)
    b1_2d = jnp.asarray(b1, jnp.float32).reshape(1, hidden)
    b2_2d = jnp.asarray(b2, jnp.float32).reshape(1, C)

    slab_bytes = C * HW * itemsize
    weight_bytes = 4 * (2 * C * hidden + hidden + C)       # f32 weights (tiny)
    # 2x in + 2x out double buffers + 1 elementwise temp + double-buffered weights.
    fused_fits = (5 * slab_bytes + 2 * weight_bytes + (1 << 20)) <= fused_budget

    # v7x megacore (2 TCs/chip, detected via the 64 MiB-per-TC VMEM proxy):
    # with a single batch element a fused grid=(1,) leaves one core idle, so
    # prefer the two-pass path whose pass-2 spatial grid shards across cores.
    multi_core_likely = cap <= 96 * 1024 * 1024
    prefer_two_pass_b1 = (B == 1 and multi_core_likely and HW >= 256
                          and slab_bytes >= (1 << 20))

    use_fused = (not force_two_pass) and hw_tile is None and fused_fits \
        and not prefer_two_pass_b1

    if use_fused:
        out_flat = pl.pallas_call(
            functools.partial(_se_fused_kernel, hw=HW),
            out_shape=jax.ShapeDtypeStruct((B, C, HW), dtype),
            grid_spec=pltpu.PrefetchScalarGridSpec(
                num_scalar_prefetch=0,
                grid=(B,),
                in_specs=[
                    pl.BlockSpec((1, C, HW), lambda b: (b, 0, 0)),
                    pl.BlockSpec((C, hidden), lambda b: (0, 0)),
                    pl.BlockSpec((1, hidden), lambda b: (0, 0)),
                    pl.BlockSpec((hidden, C), lambda b: (0, 0)),
                    pl.BlockSpec((1, C), lambda b: (0, 0)),
                ],
                out_specs=pl.BlockSpec((1, C, HW), lambda b: (b, 0, 0)),
            ),
            compiler_params=pltpu.CompilerParams(
                dimension_semantics=("parallel",),
                vmem_limit_bytes=vmem_limit,
            ),
            input_output_aliases=({0: 0} if donate else {}),
        )(x_flat, w1_t, b1_2d, w2_t, b2_2d)
        return out_flat.reshape(B, C, H, W)

    # ---------------- two-pass path (large activations) ----------------
    # Independent tile sizes: pass 1 only double-buffers its input (2x tile
    # live), pass 2 double-buffers input + output (4x tile live).
    if hw_tile is not None:
        tile_pool = tile_scale = _normalize_tile(int(hw_tile), HW)
    else:
        tile_pool = _choose_hw_tile(C, HW, itemsize, vmem_limit // 4)
        tile_scale = _choose_hw_tile(C, HW, itemsize, vmem_limit // 6)
        if prefer_two_pass_b1 and tile_scale >= HW:
            # Split pass 2 into >= 2 spatial tiles so both TCs get work.
            half = max(128, ((HW // 2) // 128) * 128)
            if half < HW:
                tile_scale = half

    n_tp = (HW + tile_pool - 1) // tile_pool
    n_ts = (HW + tile_scale - 1) // tile_scale

    s = pl.pallas_call(
        functools.partial(_pool_excite_kernel, hw=HW, tile=tile_pool),
        out_shape=jax.ShapeDtypeStruct((B, C, 1), dtype),
        grid_spec=pltpu.PrefetchScalarGridSpec(
            num_scalar_prefetch=0,
            grid=(B, n_tp),
            in_specs=[
                pl.BlockSpec((1, C, tile_pool), lambda b, t: (b, 0, t)),
                pl.BlockSpec((C, hidden), lambda b, t: (0, 0)),
                pl.BlockSpec((1, hidden), lambda b, t: (0, 0)),
                pl.BlockSpec((hidden, C), lambda b, t: (0, 0)),
                pl.BlockSpec((1, C), lambda b, t: (0, 0)),
            ],
            out_specs=pl.BlockSpec((1, C, 1), lambda b, t: (b, 0, 0)),
            scratch_shapes=[pltpu.VMEM((1, C, _CHUNK_LANES), jnp.float32)],
        ),
        compiler_params=pltpu.CompilerParams(
            dimension_semantics=("parallel", "arbitrary"),
            vmem_limit_bytes=vmem_limit,
        ),
    )(x_flat, w1_t, b1_2d, w2_t, b2_2d)

    out_flat = pl.pallas_call(
        _scale_kernel,
        out_shape=jax.ShapeDtypeStruct((B, C, HW), dtype),
        grid_spec=pltpu.PrefetchScalarGridSpec(
            num_scalar_prefetch=0,
            grid=(B, n_ts),
            in_specs=[
                pl.BlockSpec((1, C, 1), lambda b, t: (b, 0, 0)),
                pl.BlockSpec((1, C, tile_scale), lambda b, t: (b, 0, t)),
            ],
            out_specs=pl.BlockSpec((1, C, tile_scale), lambda b, t: (b, 0, t)),
        ),
        compiler_params=pltpu.CompilerParams(
            dimension_semantics=("parallel", "parallel"),
            vmem_limit_bytes=vmem_limit,
        ),
        input_output_aliases=({1: 0} if donate else {}),
    )(s, x_flat)

    return out_flat.reshape(B, C, H, W)


@functools.partial(jax.jit, static_argnames=("force_two_pass", "hw_tile", "donate"))
def se_layer(x_nchw, w1, b1, w2, b2, *, force_two_pass=False, hw_tile=None,
             donate=False):
    """SELayer forward: x * h_sigmoid(W2 @ relu(W1 @ avgpool(x) + b1) + b2).

    `donate=True` aliases x's buffer to the output (use when the caller donates
    x at the jit boundary); otherwise XLA keeps x intact via a copy."""
    return _se_layer_impl(x_nchw, w1, b1, w2, b2, force_two_pass, hw_tile, donate)


def reference_se_layer(x, w1, b1, w2, b2):
    """Pure-JAX reference matching the PyTorch module."""
    y = jnp.mean(x.astype(jnp.float32), axis=(2, 3))        # (B, C)
    y = jnp.maximum(y @ w1.T + b1, 0.0)                     # (B, hidden)
    y = y @ w2.T + b2                                        # (B, C)
    y = jnp.clip(y + 3.0, 0.0, 6.0) / 6.0                   # h_sigmoid
    return x * y[:, :, None, None].astype(x.dtype)


if __name__ == "__main__":
    # Small shapes consistent with the module: batch=2, channels=4, spatial=16,
    # hidden layer = 8.
    B, C, H, W = 2, 4, 16, 16
    hidden = 8

    key = jax.random.PRNGKey(0)
    kx, kw1, kb1, kw2, kb2 = jax.random.split(key, 5)

    x = jax.random.normal(kx, (B, C, H, W), dtype=jnp.float32)
    w1 = jax.random.uniform(kw1, (hidden, C), jnp.float32, -0.5, 0.5)    # Linear(C -> hidden)
    b1 = jax.random.uniform(kb1, (hidden,), jnp.float32, -0.5, 0.5)
    w2 = jax.random.uniform(kw2, (C, hidden), jnp.float32, -0.35, 0.35)  # Linear(hidden -> C)
    b2 = jax.random.uniform(kb2, (C,), jnp.float32, -0.35, 0.35)

    ref = reference_se_layer(x, w1, b1, w2, b2)

    # 1) Fused single-kernel path (grid over batch) — auto-selected for small slabs.
    out_fused = jax.block_until_ready(se_layer(x, w1, b1, w2, b2))
    assert out_fused.shape == (B, C, H, W)
    assert jnp.allclose(out_fused, ref, atol=1e-5, rtol=1e-5), "fused path mismatch"

    # 2) Two-pass path with spatial tiling (HW=256, tile=128 -> 2 tiles), with
    #    input_output_aliases exercised via donate=True.
    out_two = jax.block_until_ready(
        se_layer(x, w1, b1, w2, b2, force_two_pass=True, hw_tile=128, donate=True))
    assert jnp.allclose(out_two, ref, atol=1e-5, rtol=1e-5), "two-pass path mismatch"

    # 3) Ragged spatial size (HW = 169, not a multiple of 128) through both paths.
    x_r = jax.random.normal(kx, (B, C, 13, 13), dtype=jnp.float32)
    ref_r = reference_se_layer(x_r, w1, b1, w2, b2)
    out_r1 = jax.block_until_ready(se_layer(x_r, w1, b1, w2, b2))
    out_r2 = jax.block_until_ready(
        se_layer(x_r, w1, b1, w2, b2, force_two_pass=True, hw_tile=128))
    assert jnp.allclose(out_r1, ref_r, atol=1e-5, rtol=1e-5), "fused ragged mismatch"
    assert jnp.allclose(out_r2, ref_r, atol=1e-5, rtol=1e-5), "two-pass ragged mismatch"

    # 4) bf16 activations: traffic stays bf16, accumulation in f32.
    x_bf = x.astype(jnp.bfloat16)
    ref_bf = reference_se_layer(x_bf, w1, b1, w2, b2).astype(jnp.float32)
    out_bf = jax.block_until_ready(se_layer(x_bf, w1, b1, w2, b2)).astype(jnp.float32)
    assert jnp.allclose(out_bf, ref_bf, atol=5e-2, rtol=5e-2), "bf16 path mismatch"

    print("KERNEL_OK")
</pallas_src>

<mosaic_0001>
module attributes {stable_mosaic.version = 11 : i64} {
  func.func @_se_fused_kernel(%arg0: i32, %arg1: memref<1x4x256xf32, #tpu.memory_space<vmem>>, %arg2: memref<4x8xf32, #tpu.memory_space<vmem>>, %arg3: memref<1x8xf32, #tpu.memory_space<vmem>>, %arg4: memref<8x4xf32, #tpu.memory_space<vmem>>, %arg5: memref<1x4xf32, #tpu.memory_space<vmem>>, %arg6: memref<1x4x256xf32, #tpu.memory_space<vmem>>) attributes {dimension_semantics = [#tpu.dimension_semantics<parallel>], iteration_bounds = array<i64: 2>, scalar_prefetch = 0 : i64, scratch_operands = 0 : i64, tpu.core_type = #tpu.core_type<tc>, window_params = [{transform_indices = @transform_0, window_bounds = array<i64: 1, 4, 256>}, {pipeline_mode = #tpu.pipeline_mode<synchronous>, transform_indices = @transform_1, window_bounds = array<i64: 4, 8>}, {pipeline_mode = #tpu.pipeline_mode<synchronous>, transform_indices = @transform_2, window_bounds = array<i64: 1, 8>}, {pipeline_mode = #tpu.pipeline_mode<synchronous>, transform_indices = @transform_3, window_bounds = array<i64: 8, 4>}, {pipeline_mode = #tpu.pipeline_mode<synchronous>, transform_indices = @transform_4, window_bounds = array<i64: 1, 4>}, {transform_indices = @transform_5, window_bounds = array<i64: 1, 4, 256>}]} {
    %cst = arith.constant 0.000000e+00 : f32
    %0 = vector.broadcast %cst : f32 to vector<1x4x128xf32>
    %c0 = arith.constant 0 : index
    %c0_0 = arith.constant 0 : index
    %c0_1 = arith.constant 0 : index
    %1 = vector.load %arg1[%c0, %c0_0, %c0_1] : memref<1x4x256xf32, #tpu.memory_space<vmem>>, vector<1x4x128xf32>
    %2 = arith.addf %0, %1 : vector<1x4x128xf32>
    %c0_2 = arith.constant 0 : index
    %c0_3 = arith.constant 0 : index
    %c128 = arith.constant 128 : index
    %3 = vector.load %arg1[%c0_2, %c0_3, %c128] : memref<1x4x256xf32, #tpu.memory_space<vmem>>, vector<1x4x128xf32>
    %4 = arith.addf %2, %3 : vector<1x4x128xf32>
    %cst_4 = arith.constant dense<0.000000e+00> : vector<1x4xf32>
    %5 = vector.multi_reduction <add>, %4, %cst_4 [2] : vector<1x4x128xf32> to vector<1x4xf32>
    %c0_5 = arith.constant 0 : index
    %c0_6 = arith.constant 0 : index
    %6 = vector.load %arg2[%c0_5, %c0_6] : memref<4x8xf32, #tpu.memory_space<vmem>>, vector<4x8xf32>
    %cst_7 = arith.constant dense<0.000000e+00> : vector<1x8xf32>
    %7 = tpu.matmul %5, %6, %cst_7 {dimension_numbers = #tpu.dot_dimension_numbers<[1], [0], [0], [1], [0, 0, 1, 1], [], []>} : vector<1x4xf32>, vector<4x8xf32>, vector<1x8xf32> -> vector<1x8xf32>
    %c0_8 = arith.constant 0 : index
    %c0_9 = arith.constant 0 : index
    %8 = vector.load %arg3[%c0_8, %c0_9] : memref<1x8xf32, #tpu.memory_space<vmem>>, vector<1x8xf32>
    %9 = arith.addf %7, %8 : vector<1x8xf32>
    %cst_10 = arith.constant 0.000000e+00 : f32
    %10 = vector.broadcast %cst_10 : f32 to vector<1x8xf32>
    %11 = arith.maximumf %9, %10 : vector<1x8xf32>
    %c0_11 = arith.constant 0 : index
    %c0_12 = arith.constant 0 : index
    %12 = vector.load %arg4[%c0_11, %c0_12] : memref<8x4xf32, #tpu.memory_space<vmem>>, vector<8x4xf32>
    %cst_13 = arith.constant dense<0.000000e+00> : vector<1x4xf32>
    %13 = tpu.matmul %11, %12, %cst_13 {dimension_numbers = #tpu.dot_dimension_numbers<[1], [0], [0], [1], [0, 0, 1, 1], [], []>} : vector<1x8xf32>, vector<8x4xf32>, vector<1x4xf32> -> vector<1x4xf32>
    %c0_14 = arith.constant 0 : index
    %c0_15 = arith.constant 0 : index
    %14 = vector.load %arg5[%c0_14, %c0_15] : memref<1x4xf32, #tpu.memory_space<vmem>>, vector<1x4xf32>
    %15 = arith.addf %13, %14 : vector<1x4xf32>
    %cst_16 = arith.constant 3.000000e+00 : f32
    %16 = vector.broadcast %cst_16 : f32 to vector<1x4xf32>
    %17 = arith.addf %15, %16 : vector<1x4xf32>
    %cst_17 = arith.constant 0.000000e+00 : f32
    %cst_18 = arith.constant 6.000000e+00 : f32
    %18 = vector.broadcast %cst_17 : f32 to vector<1x4xf32>
    %19 = arith.maximumf %18, %17 : vector<1x4xf32>
    %20 = vector.broadcast %cst_18 : f32 to vector<1x4xf32>
    %21 = arith.minimumf %20, %19 : vector<1x4xf32>
    %cst_19 = arith.constant 0.166666672 : f32
    %22 = vector.broadcast %cst_19 : f32 to vector<1x4xf32>
    %23 = arith.mulf %21, %22 : vector<1x4xf32>
    %c0_20 = arith.constant 0 : index
    %c0_21 = arith.constant 0 : index
    %c0_22 = arith.constant 0 : index
    %24 = vector.load %arg1[%c0_20, %c0_21, %c0_22] : memref<1x4x256xf32, #tpu.memory_space<vmem>>, vector<1x4x256xf32>
    %25 = vector.shape_cast %23 : vector<1x4xf32> to vector<1x4x1xf32>
    %26 = vector.broadcast %25 : vector<1x4x1xf32> to vector<1x4x256xf32>
    %27 = arith.mulf %24, %26 : vector<1x4x256xf32>
    %c0_23 = arith.constant 0 : index
    %c0_24 = arith.constant 0 : index
    %c0_25 = arith.constant 0 : index
    %28 = vector.load %arg6[%c0_23, %c0_24, %c0_25] : memref<1x4x256xf32, #tpu.memory_space<vmem>>, vector<1x4x256xf32>
    tpu.vector_store %arg6[%c0_23, %c0_24, %c0_25], %27 {strides = array<i32>} : memref<1x4x256xf32, #tpu.memory_space<vmem>>, vector<1x4x256xf32>,
    return
  }
  func.func @transform_0(%arg0: i32) -> (i32, i32, i32) {
    %c0_i32 = arith.constant 0 : i32
    %c0_i32_0 = arith.constant 0 : i32
    %c0_i32_1 = arith.constant 0 : i32
    return %arg0, %c0_i32, %c0_i32_0 : i32, i32, i32
  }
  func.func @transform_1(%arg0: i32) -> (i32, i32) {
    %c0_i32 = arith.constant 0 : i32
    %c0_i32_0 = arith.constant 0 : i32
    %c0_i32_1 = arith.constant 0 : i32
    return %c0_i32, %c0_i32_0 : i32, i32
  }
  func.func @transform_2(%arg0: i32) -> (i32, i32) {
    %c0_i32 = arith.constant 0 : i32
    %c0_i32_0 = arith.constant 0 : i32
    %c0_i32_1 = arith.constant 0 : i32
    return %c0_i32, %c0_i32_0 : i32, i32
  }
  func.func @transform_3(%arg0: i32) -> (i32, i32) {
    %c0_i32 = arith.constant 0 : i32
    %c0_i32_0 = arith.constant 0 : i32
    %c0_i32_1 = arith.constant 0 : i32
    return %c0_i32, %c0_i32_0 : i32, i32
  }
  func.func @transform_4(%arg0: i32) -> (i32, i32) {
    %c0_i32 = arith.constant 0 : i32
    %c0_i32_0 = arith.constant 0 : i32
    %c0_i32_1 = arith.constant 0 : i32
    return %c0_i32, %c0_i32_0 : i32, i32
  }
  func.func @transform_5(%arg0: i32) -> (i32, i32, i32) {
    %c0_i32 = arith.constant 0 : i32
    %c0_i32_0 = arith.constant 0 : i32
    %c0_i32_1 = arith.constant 0 : i32
    return %arg0, %c0_i32, %c0_i32_0 : i32, i32, i32
  }
}

</mosaic_0001>

<llo_original>
// kernel: se_layer.1
$region0: #{se_layer.1}
  #allocation0 [shape = 'u32[]', space=smem, size = 0x4, offset = 0x4, fixed_abs, tag = 'smem constant byte address 0x4 - core index']
  #allocation1 [shape = 'u32[144,128]{1,0:T(1,128)}', space=vmem, size = 0x12000, scoped, tag = 'internal scratch']
  %s0 = inlined_call_operand.vmem [shape: f32[2,4,256], index: 0, kind: input, shape index: {}]
  %s1 = inlined_call_operand.vmem [shape: f32[4,8], index: 1, kind: input, shape index: {}]
  %s2 = inlined_call_operand.vmem [shape: f32[1,8], index: 2, kind: input, shape index: {}]
  %s3 = inlined_call_operand.vmem [shape: f32[8,4], index: 3, kind: input, shape index: {}]
  %s4 = inlined_call_operand.vmem [shape: f32[1,4], index: 4, kind: input, shape index: {}]
  %s5 = inlined_call_operand.vmem [shape: f32[2,4,256], index: 5, kind: output, shape index: {}]
  %s6 = sld [smem:[#allocation0]]
  $region53: #{se_layer.1} parent=0
    _
  %s8 = ssub.s32 1, %s6
  %s9 = scalar_select 0, %s8, %s6
  loop: start=0, step=1, limit=4
  $region2: #{se_layer.1} parent=0 // loop_pre_header
    _
  $region3: #{se_layer.1} parent=0 // loop_header
    %s11 = sphi 0, %s15
    %p12 = scmp.ge.s32.totalorder %s11, 4
    %s21 = sphi 0, %s23
    %s24 = sphi 0, %s21
    %s25 = sphi 0, %s24
    %s41 = sphi 0, %s25
    %s45 = sphi 0, %s45
    %s47 = sphi 0, %s45
    %s48 = sphi 0, %s47
    %s62 = sphi 0, %s48
    %s66 = sphi 0, %s66
    %s68 = sphi 0, %s66
    %s69 = sphi 0, %s68
    %s83 = sphi 0, %s69
    %s87 = sphi 0, %s87
    %s89 = sphi 0, %s87
    %s90 = sphi 0, %s89
    %s104 = sphi 0, %s90
    %s108 = sphi 0, %s108
    %s110 = sphi 0, %s108
    %s111 = sphi 0, %s110
    %s125 = sphi 0, %s111
    %s131 = sphi 0, %s133
    %s134 = sphi 0, %s131
    %s135 = sphi 0, %s134
    %s151 = sphi 0, %s135
  $region4: #{se_layer.1} parent=0 // loop_header_branch
    %14 = sbr.rel (%p12) target = $region8
  $region5: #{se_layer.1} parent=0 // loop_body
    %s16 = ssub.s32 %s11, 1
    %s17 = ssub.s32 %s11, 2
    %s18 = sadd.s32 %s11, 1
    %s19 = ssub.s32 %s11, %s18
    %p20 = scmp.eq.s32.totalorder %s19, 0
    %s22 = sadd.s32 %s21, 1
    %s23 = scalar_select %p20, %s21, %s22
    %p26 = pneg %p20
    %p27 = scmp.eq.s32.totalorder %s11, 1
    %p28 = por %p26, %p27
    %p29 = scmp.ne.s32.totalorder %s21, %s24
    %p30 = scmp.eq.s32.totalorder %s11, 0
    %p31 = por %p29, %p30
    %p32 = scmp.ne.s32.totalorder %s21, %s24
    %p33 = scmp.eq.s32.totalorder %s16, 1
    %p34 = por %p32, %p33
    %p35 = scmp.ne.s32.totalorder %s24, %s25
    %p36 = scmp.eq.s32.totalorder %s16, 0
    %p37 = por %p35, %p36
    %p38 = scmp.ne.s32.totalorder %s24, %s25
    %p39 = scmp.eq.s32.totalorder %s17, 1
    %p40 = por %p38, %p39
    %p42 = scmp.ne.s32.totalorder %s25, %s41
    %p43 = scmp.eq.s32.totalorder %s17, 0
    %p44 = por %p42, %p43
    %s46 = sadd.s32 %s45, 1
    %p49 = scmp.eq.s32.totalorder %s11, 1
    %p50 = scmp.ne.s32.totalorder %s45, %s47
    %p51 = scmp.eq.s32.totalorder %s11, 0
    %p52 = por %p50, %p51
    %p53 = scmp.ne.s32.totalorder %s45, %s47
    %p54 = scmp.eq.s32.totalorder %s16, 1
    %p55 = por %p53, %p54
    %p56 = scmp.ne.s32.totalorder %s47, %s48
    %p57 = scmp.eq.s32.totalorder %s16, 0
    %p58 = por %p56, %p57
    %p59 = scmp.ne.s32.totalorder %s47, %s48
    %p60 = scmp.eq.s32.totalorder %s17, 1
    %p61 = por %p59, %p60
    %p63 = scmp.ne.s32.totalorder %s48, %s62
    %p64 = scmp.eq.s32.totalorder %s17, 0
    %p65 = por %p63, %p64
    %s67 = sadd.s32 %s66, 1
    %p70 = scmp.eq.s32.totalorder %s11, 1
    %p71 = scmp.ne.s32.totalorder %s66, %s68
    %p72 = scmp.eq.s32.totalorder %s11, 0
    %p73 = por %p71, %p72
    %p74 = scmp.ne.s32.totalorder %s66, %s68
    %p75 = scmp.eq.s32.totalorder %s16, 1
    %p76 = por %p74, %p75
    %p77 = scmp.ne.s32.totalorder %s68, %s69
    %p78 = scmp.eq.s32.totalorder %s16, 0
    %p79 = por %p77, %p78
    %p80 = scmp.ne.s32.totalorder %s68, %s69
    %p81 = scmp.eq.s32.totalorder %s17, 1
    %p82 = por %p80, %p81
    %p84 = scmp.ne.s32.totalorder %s69, %s83
    %p85 = scmp.eq.s32.totalorder %s17, 0
    %p86 = por %p84, %p85
    %s88 = sadd.s32 %s87, 1
    %p91 = scmp.eq.s32.totalorder %s11, 1
    %p92 = scmp.ne.s32.totalorder %s87, %s89
    %p93 = scmp.eq.s32.totalorder %s11, 0
    %p94 = por %p92, %p93
    %p95 = scmp.ne.s32.totalorder %s87, %s89
    %p96 = scmp.eq.s32.totalorder %s16, 1
    %p97 = por %p95, %p96
    %p98 = scmp.ne.s32.totalorder %s89, %s90
    %p99 = scmp.eq.s32.totalorder %s16, 0
    %p100 = por %p98, %p99
    %p101 = scmp.ne.s32.totalorder %s89, %s90
    %p102 = scmp.eq.s32.totalorder %s17, 1
    %p103 = por %p101, %p102
    %p105 = scmp.ne.s32.totalorder %s90, %s104
    %p106 = scmp.eq.s32.totalorder %s17, 0
    %p107 = por %p105, %p106
    %s109 = sadd.s32 %s108, 1
    %p112 = scmp.eq.s32.totalorder %s11, 1
    %p113 = scmp.ne.s32.totalorder %s108, %s110
    %p114 = scmp.eq.s32.totalorder %s11, 0
    %p115 = por %p113, %p114
    %p116 = scmp.ne.s32.totalorder %s108, %s110
    %p117 = scmp.eq.s32.totalorder %s16, 1
    %p118 = por %p116, %p117
    %p119 = scmp.ne.s32.totalorder %s110, %s111
    %p120 = scmp.eq.s32.totalorder %s16, 0
    %p121 = por %p119, %p120
    %p122 = scmp.ne.s32.totalorder %s110, %s111
    %p123 = scmp.eq.s32.totalorder %s17, 1
    %p124 = por %p122, %p123
    %p126 = scmp.ne.s32.totalorder %s111, %s125
    %p127 = scmp.eq.s32.totalorder %s17, 0
    %p128 = por %p126, %p127
    %s129 = ssub.s32 %s11, %s18
    %p130 = scmp.eq.s32.totalorder %s129, 0
    %s132 = sadd.s32 %s131, 1
    %s133 = scalar_select %p130, %s131, %s132
    %p136 = pneg %p130
    %p137 = scmp.eq.s32.totalorder %s11, 1
    %p138 = por %p136, %p137
    %p139 = scmp.ne.s32.totalorder %s131, %s134
    %p140 = scmp.eq.s32.totalorder %s11, 0
    %p141 = por %p139, %p140
    %p142 = scmp.ne.s32.totalorder %s131, %s134
    %p143 = scmp.eq.s32.totalorder %s16, 1
    %p144 = por %p142, %p143
    %p145 = scmp.ne.s32.totalorder %s134, %s135
    %p146 = scmp.eq.s32.totalorder %s16, 0
    %p147 = por %p145, %p146
    %p148 = scmp.ne.s32.totalorder %s134, %s135
    %p149 = scmp.eq.s32.totalorder %s17, 1
    %p150 = por %p148, %p149
    %p152 = scmp.ne.s32.totalorder %s135, %s151
    %p153 = scmp.eq.s32.totalorder %s17, 0
    %p154 = por %p152, %p153
    %p155 = scmp.le.s32.totalorder 1, %s11
    %p156 = scmp.lt.s32.totalorder %s11, 3
    %p157 = pnand %p155, %p156
    %p158 = pneg %p157
    // Predicated region
    $region9: #{se_layer.1} parent=5 // pred_check
      _
    $region10: #{se_layer.1} parent=5 // pred_check_branch
      %160 = sbr.rel (%p157) target = $region12
    $region11: #{se_layer.1} parent=5 // pred_region
      %s161 = ssub.s32 %s11, 1
      // Predicated region
      $region13: #{se_layer.1} parent=11 // pred_check
        %p162 = pneg %p58
      $region14: #{se_layer.1} parent=11 // pred_check_branch
        %164 = sbr.rel (%p162) target = $region16
      $region15: #{se_layer.1} parent=11 // pred_region
        _
      $region16: #{se_layer.1} parent=11 // pred_fallthru
        _
      // Predicated region
      $region17: #{se_layer.1} parent=11 // pred_check
        %p165 = pneg %p79
      $region18: #{se_layer.1} parent=11 // pred_check_branch
        %167 = sbr.rel (%p165) target = $region20
      $region19: #{se_layer.1} parent=11 // pred_region
        _
      $region20: #{se_layer.1} parent=11 // pred_fallthru
        _
      // Predicated region
      $region21: #{se_layer.1} parent=11 // pred_check
        %p168 = pneg %p100
      $region22: #{se_layer.1} parent=11 // pred_check_branch
        %170 = sbr.rel (%p168) target = $region24
      $region23: #{se_layer.1} parent=11 // pred_region
        _
      $region24: #{se_layer.1} parent=11 // pred_fallthru
        _
      // Predicated region
      $region25: #{se_layer.1} parent=11 // pred_check
        %p171 = pneg %p121
      $region26: #{se_layer.1} parent=11 // pred_check_branch
        %173 = sbr.rel (%p171) target = $region28
      $region27: #{se_layer.1} parent=11 // pred_region
        _
      $region28: #{se_layer.1} parent=11 // pred_fallthru
        _
    $region12: #{se_layer.1} parent=5 // pred_fallthru
      _
    %p174 = scmp.lt.s32.totalorder %s11, 2
    // Predicated region
    $region29: #{se_layer.1} parent=5 // pred_check
      %p175 = pneg %p174
    $region30: #{se_layer.1} parent=5 // pred_check_branch
      %177 = sbr.rel (%p175) target = $region32
    $region31: #{se_layer.1} parent=5 // pred_region
      // Predicated region
      $region33: #{se_layer.1} parent=31 // pred_check
        %p178 = pneg %p31
      $region34: #{se_layer.1} parent=31 // pred_check_branch
        %180 = sbr.rel (%p178) target = $region36
      $region35: #{se_layer.1} parent=31 // pred_region
        %p181 = scmp.lt.s32.totalorder %s11, 1
        %s182 = scalar_select %p181, %s11, 1
        %s183 = smul.addr %s182, 2
        %s184 = smul.addr %s183, 4
        %s185 = scalar_lea.vmem %s0, %s184
      $region36: #{se_layer.1} parent=31 // pred_fallthru
        _
    $region32: #{se_layer.1} parent=5 // pred_fallthru
      _
    %p186 = scmp.le.s32.totalorder 1, %s11
    %p187 = scmp.lt.s32.totalorder %s11, 3
    %p188 = pnand %p186, %p187
    %p189 = pneg %p188
    // Predicated region
    $region37: #{se_layer.1} parent=5 // pred_check
      _
    $region38: #{se_layer.1} parent=5 // pred_check_branch
      %191 = sbr.rel (%p188) target = $region40
    $region39: #{se_layer.1} parent=5 // pred_region
      %s192 = ssub.s32 %s11, 1
      %p193 = scmp.lt.s32.totalorder %s16, 1
      %s194 = scalar_select %p193, %s16, 1
      %s195 = smul.addr %s194, 2
      %s196 = smul.addr %s195, 4
      %s197 = scalar_lea.vmem %s0, %s196
      %p198 = pneg %p37
      %p199 = pneg %p34
      %p200 = pneg %p58
      %p201 = pneg %p55
      %p202 = pneg %p79
      %p203 = pneg %p76
      %p204 = pneg %p100
      %p205 = pneg %p97
      %p206 = pneg %p121
      %p207 = pneg %p118
      %p208 = pneg %p147
      %p209 = pneg %p144
      %p210 = scmp.lt.s32.totalorder %s16, 1
      %s211 = scalar_select %p210, %s16, 1
      %s212 = smul.addr %s211, 2
      %s213 = smul.addr %s212, 4
      %s214 = scalar_lea.vmem %s5, %s213
      %p215 = scmp.lt.s32.totalorder %s16, 1
      %s216 = scalar_select %p215, %s16, 1
      %s217 = smul.addr %s216, 2
      %s218 = smul.addr %s217, 4
      %s219 = scalar_lea.vmem %s0, %s218
      %p220 = scmp.lt.s32.totalorder %s16, 1
      %s221 = scalar_select %p220, %s16, 1
      %s222 = smul.addr %s221, 2
      %s223 = smul.addr %s222, 4
      %s224 = scalar_lea.vmem %s5, %s223
      %v225 = vld [vmem:[%s219] sm:$0xf]
      %v226 = vadd.f32 %v225, 0.0
      %v227 = vld [vmem:[%s219 + $0x4] sm:$0xf]
      %v228 = vadd.f32 %v226, %v227
      %vm229 = vcmask 1043456
      %v230 = vsel %vm229, %v228, 0.0
      %231 = vadd.xlane.f32.xlu0 %v230
      %v232 = vpop.xlane.xlu0 %231
      %v233 = vld [vmem:[%s1] sm:$0xf]
      %v234 = vld [vmem:[%s2] sm:$0x1]
      %v236 = vlaneseq
      %v237 = vand.u32 %v236, 127
      %v238 = vlaneseq
      %v239 = vshrl.u32 %v238, 7
      %v240 = vsub.s32 %v237, %v239
      %v241 = vrot.slane %v232, %v240
      %vm242 = vcmask 31744
      %v243 = vsel %vm242, %v241, 0
      %v246 = vsel %vm229, %v233, 0
      %248 = vmatprep.subr.mxu0 0.0
      %249 = vmatpush1.msra.mxu0 %v246
      %250 = vmatprep.subr.mxu0 0.0
      %251 = vmatpush1.msra.mxu0 0.0
      %252 = vmatprep.subr.mxu0 0.0
      %253 = vmatpush1.msra.mxu0 0.0
      %254 = vmatprep.subr.mxu0 0.0
      %255 = vmatpush1.msra.mxu0 0.0
      %256 = vmatprep.subr.mxu0 0.0
      %257 = vmatpush1.msra.mxu0 0.0
      %258 = vmatprep.subr.mxu0 0.0
      %259 = vmatpush1.msra.mxu0 0.0
      %260 = vmatprep.subr.mxu0 0.0
      %261 = vmatpush1.msra.mxu0 0.0
      %262 = vmatprep.subr.mxu0 0.0
      %263 = vmatpush1.msra.mxu0 0.0
      %264 = vmatprep.subr.mxu0 0.0
      %265 = vmatpush1.msra.mxu0 0.0
      %266 = vmatprep.subr.mxu0 0.0
      %267 = vmatpush1.msra.mxu0 0.0
      %268 = vmatprep.subr.mxu0 0.0
      %269 = vmatpush1.msra.mxu0 0.0
      %270 = vmatprep.subr.mxu0 0.0
      %271 = vmatpush1.msra.mxu0 0.0
      %272 = vmatprep.subr.mxu0 0.0
      %273 = vmatpush1.msra.mxu0 0.0
      %274 = vmatprep.subr.mxu0 0.0
      %275 = vmatpush1.msra.mxu0 0.0
      %276 = vmatprep.subr.mxu0 0.0
      %277 = vmatpush1.msra.mxu0 0.0
      %278 = vmatprep.subr.mxu0 0.0
      %279 = vmatpush1.msra.mxu0 0.0
      %280 = vmatprep.subr.mxu0 0.0
      %281 = vmatpush1.msra.mxu0 0.0
      %282 = vmatprep.subr.mxu0 0.0
      %283 = vmatpush1.msra.mxu0 0.0
      %284 = vmatprep.subr.mxu0 0.0
      %285 = vmatpush1.msra.mxu0 0.0
      %286 = vmatprep.subr.mxu0 0.0
      %287 = vmatpush1.msra.mxu0 0.0
      %288 = vmatprep.subr.mxu0 0.0
      %289 = vmatpush1.msra.mxu0 0.0
      %290 = vmatprep.subr.mxu0 0.0
      %291 = vmatpush1.msra.mxu0 0.0
      %292 = vmatprep.subr.mxu0 0.0
      %293 = vmatpush1.msra.mxu0 0.0
      %294 = vmatprep.subr.mxu0 0.0
      %295 = vmatpush1.msra.mxu0 0.0
      %296 = vmatprep.subr.mxu0 0.0
      %297 = vmatpush1.msra.mxu0 0.0
      %298 = vmatprep.subr.mxu0 0.0
      %299 = vmatpush1.msra.mxu0 0.0
      %300 = vmatprep.subr.mxu0 0.0
      %301 = vmatpush1.msra.mxu0 0.0
      %302 = vmatprep.subr.mxu0 0.0
      %303 = vmatpush1.msra.mxu0 0.0
      %304 = vmatprep.subr.mxu0 0.0
      %305 = vmatpush1.msra.mxu0 0.0
      %306 = vmatprep.subr.mxu0 0.0
      %307 = vmatpush1.msra.mxu0 0.0
      %308 = vmatprep.subr.mxu0 0.0
      %309 = vmatpush1.msra.mxu0 0.0
      %310 = vmatprep.subr.mxu0 0.0
      %311 = vmatpush1.msra.mxu0 0.0
      %312 = vmatprep.mubr.f32.mxu0 0.0
      %313 = vmatmul.mubr.f32.gmra.mrb[0].mxu0 %v243
      %v314 = vpop.f32.mrb[0].mxu0
      %v315 = vadd.f32 %v234, %v314
      %v316 = vpop.f32.mrb[0].mxu0
      %317 = vdwg.mxu0
      %v318 = vmax.f32 %v315, 0.0
      %v319 = vld [vmem:[%s3] sm:$0xff]
      %v320 = vld [vmem:[%s4] sm:$0x1]
      %vm321 = vcmask 64512
      %v323 = vsel %vm321, %v318, 0
      %325 = vmatprep.subr.mxu0 0.0
      %326 = vmatpush1.msra.mxu0 %v319
      %327 = vmatprep.subr.mxu0 0.0
      %328 = vmatpush1.msra.mxu0 0.0
      %329 = vmatprep.subr.mxu0 0.0
      %330 = vmatpush1.msra.mxu0 0.0
      %331 = vmatprep.subr.mxu0 0.0
      %332 = vmatpush1.msra.mxu0 0.0
      %333 = vmatprep.subr.mxu0 0.0
      %334 = vmatpush1.msra.mxu0 0.0
      %335 = vmatprep.subr.mxu0 0.0
      %336 = vmatpush1.msra.mxu0 0.0
      %337 = vmatprep.subr.mxu0 0.0
      %338 = vmatpush1.msra.mxu0 0.0
      %339 = vmatprep.subr.mxu0 0.0
      %340 = vmatpush1.msra.mxu0 0.0
      %341 = vmatprep.subr.mxu0 0.0
      %342 = vmatpush1.msra.mxu0 0.0
      %343 = vmatprep.subr.mxu0 0.0
      %344 = vmatpush1.msra.mxu0 0.0
      %345 = vmatprep.subr.mxu0 0.0
      %346 = vmatpush1.msra.mxu0 0.0
      %347 = vmatprep.subr.mxu0 0.0
      %348 = vmatpush1.msra.mxu0 0.0
      %349 = vmatprep.subr.mxu0 0.0
      %350 = vmatpush1.msra.mxu0 0.0
      %351 = vmatprep.subr.mxu0 0.0
      %352 = vmatpush1.msra.mxu0 0.0
      %353 = vmatprep.subr.mxu0 0.0
      %354 = vmatpush1.msra.mxu0 0.0
      %355 = vmatprep.subr.mxu0 0.0
      %356 = vmatpush1.msra.mxu0 0.0
      %357 = vmatprep.subr.mxu0 0.0
      %358 = vmatpush1.msra.mxu0 0.0
      %359 = vmatprep.subr.mxu0 0.0
      %360 = vmatpush1.msra.mxu0 0.0
      %361 = vmatprep.subr.mxu0 0.0
      %362 = vmatpush1.msra.mxu0 0.0
      %363 = vmatprep.subr.mxu0 0.0
      %364 = vmatpush1.msra.mxu0 0.0
      %365 = vmatprep.subr.mxu0 0.0
      %366 = vmatpush1.msra.mxu0 0.0
      %367 = vmatprep.subr.mxu0 0.0
      %368 = vmatpush1.msra.mxu0 0.0
      %369 = vmatprep.subr.mxu0 0.0
      %370 = vmatpush1.msra.mxu0 0.0
      %371 = vmatprep.subr.mxu0 0.0
      %372 = vmatpush1.msra.mxu0 0.0
      %373 = vmatprep.subr.mxu0 0.0
      %374 = vmatpush1.msra.mxu0 0.0
      %375 = vmatprep.subr.mxu0 0.0
      %376 = vmatpush1.msra.mxu0 0.0
      %377 = vmatprep.subr.mxu0 0.0
      %378 = vmatpush1.msra.mxu0 0.0
      %379 = vmatprep.subr.mxu0 0.0
      %380 = vmatpush1.msra.mxu0 0.0
      %381 = vmatprep.subr.mxu0 0.0
      %382 = vmatpush1.msra.mxu0 0.0
      %383 = vmatprep.subr.mxu0 0.0
      %384 = vmatpush1.msra.mxu0 0.0
      %385 = vmatprep.subr.mxu0 0.0
      %386 = vmatpush1.msra.mxu0 0.0
      %387 = vmatprep.subr.mxu0 0.0
      %388 = vmatpush1.msra.mxu0 0.0
      %389 = vmatprep.mubr.f32.mxu0 0.0
      %390 = vmatmul.mubr.f32.gmra.mrb[0].mxu0 %v323
      %v391 = vpop.f32.mrb[0].mxu0
      %v392 = vadd.f32 %v320, %v391
      %v393 = vpop.f32.mrb[0].mxu0
      %394 = vdwg.mxu0
      %v395 = vadd.f32 %v392, 3.0
      %v396 = vmax.f32 %v395, 0.0
      %v397 = vmin.f32 %v396, 6.0
      %v398 = vmul.f32 %v397, 0.16666667
      %v399 = vld [vmem:[%s219] sm:$0xff]
      %v400 = vlaneseq
      %v401 = vshrl.u32 %v400, 7
      %v402 = vsub.s32 0, %v401
      %v403 = vrot.slane %v398, %v402
      %405 = vbcast.lane.b32.xlu0 %v403, 256
      %v406 = vpop.permute.xlu0 %405
      %v409 = vunpack.c.l.s4 839922192
      %v410 = vunpack.c.0.s8 %v409
      %v411 = vlaneseq
      %v412 = vshrl.u32 %v411, 7
      %v413 = vsub.s32 %v410, %v412
      %v414 = vrot.slane %v406, %v413
      %v416 = vmul.f32 %v399, %v414
      %417 = vst [vmem:[%s224] sm:$0xff] %v416
      %p418 = scmp.lt.s32.totalorder %s16, 1
      %s419 = scalar_select %p418, %s16, 1
      %s420 = smul.addr %s419, 2
      %s421 = smul.addr %s420, 4
      %s422 = scalar_lea.vmem %s5, %s421
      // Predicated region
      $region41: #{se_layer.1} parent=39 // pred_check
        %p423 = pneg %p144
      $region42: #{se_layer.1} parent=39 // pred_check_branch
        %425 = sbr.rel (%p423) target = $region44
      $region43: #{se_layer.1} parent=39 // pred_region
        _
      $region44: #{se_layer.1} parent=39 // pred_fallthru
        _
    $region40: #{se_layer.1} parent=5 // pred_fallthru
      _
    %p426 = scmp.le.s32.totalorder 2, %s11
    // Predicated region
    $region45: #{se_layer.1} parent=5 // pred_check
      %p427 = pneg %p426
    $region46: #{se_layer.1} parent=5 // pred_check_branch
      %429 = sbr.rel (%p427) target = $region48
    $region47: #{se_layer.1} parent=5 // pred_region
      %s430 = ssub.s32 %s11, 2
      // Predicated region
      $region49: #{se_layer.1} parent=47 // pred_check
        %p431 = pneg %p150
      $region50: #{se_layer.1} parent=47 // pred_check_branch
        %433 = sbr.rel (%p431) target = $region52
      $region51: #{se_layer.1} parent=47 // pred_region
        %p434 = scmp.lt.s32.totalorder %s17, 1
        %s435 = scalar_select %p434, %s17, 1
        %s436 = smul.addr %s435, 2
        %s437 = smul.addr %s436, 4
        %s438 = scalar_lea.vmem %s5, %s437
      $region52: #{se_layer.1} parent=47 // pred_fallthru
        _
    $region48: #{se_layer.1} parent=5 // pred_fallthru
      _
  $region6: #{se_layer.1} parent=0 // loop_footer
    %s15 = sadd.s32 1, %s11
  $region7: #{se_layer.1} parent=0 // loop_footer_branch
    %10 = sbr.rel target = $region3
  $region8: #{se_layer.1} parent=0 // loop_exit
    _

</llo_original>
